<compile_context>
chip_gen: v6e
topology: v6e:2x2x1
jax: 0.10.0
libtpu: 0.0.40
codegen_flags: <defaults>
</compile_context>

<pallas_src>
import jax
import jax.numpy as jnp
from jax.experimental import pallas as pl
from jax.experimental.pallas import tpu as pltpu


def _make_kernel(KH, THS):
    def kernel(x_ref, r_ref, m_ref, b_ref, o_ref):
        # x_ref: (1, H, W*C)        original-resolution input, (W,C) lane-packed
        # r_ref: (1, THs+2, H)      row nearest-upsample + pad expansion (0/1)
        # m_ref: (KH*W*C, Ws*O)     col-expansion-folded conv weights, KH taps
        #                           stacked along the contraction axis
        # b_ref: (1, Ws*O)          bias tiled over output columns
        # o_ref: (1, THs, Ws*O)     lane-dense output row block
        x = x_ref[0]                                                   # (H, W*C)
        r = r_ref[0]                                                   # (THs+2, H)
        # Fused nearest row-upsample (x s) + zero row-pad (=1 each side).
        rows = jnp.dot(r, x, preferred_element_type=jnp.float32)      # (THs+2, W*C)
        # Lane-concatenate the KH sublane-shifted views -> the whole 3x3 conv
        # (+ column upsample/pad, folded into m_ref) is ONE matmul, K=KH*W*C.
        cat = jnp.concatenate([rows[kh:kh + THS, :] for kh in range(KH)],
                              axis=-1)                                 # (THs, KH*W*C)
        acc = jnp.dot(cat, m_ref[...],
                      preferred_element_type=jnp.float32)              # (THs, Ws*O)
        acc = acc + b_ref[...]
        o_ref[0] = acc.astype(o_ref.dtype)
    return kernel


def resize_conv2d(x_nchw, weight_hwio, bias, scale_factor):
    """Nearest-neighbor upsample by scale_factor, then 3x3 conv (stride 1, pad 1).

    x_nchw:      (N, C, H, W)   float32
    weight_hwio: (KH, KW, C, O) float32
    bias:        (O,)           float32
    returns:     (N, O, H*s, W*s) float32  (NCHW, matching PyTorch)
    """
    N, C, H, W = x_nchw.shape
    KH, KW, _, O = weight_hwio.shape
    s = int(scale_factor)
    if s != scale_factor or s < 1:
        raise ValueError("only positive integer scale_factor is supported")
    Hs, Ws = H * s, W * s

    # One grid step per image (working set is tiny; per-step overhead dominates).
    # If N == 1, split rows 2-way so v7x's two TensorCores both get a step.
    if N >= 2 or Hs % 16 != 0:
        THS, RB = Hs, 1
    else:
        THS, RB = Hs // 2, 2

    WC = W * C                          # input lane width
    WSO = Ws * O                        # output lane width (multiple of 128 here)
    K = KH * WC                         # merged conv contraction depth
    dt = x_nchw.dtype

    # ---- layout glue at ORIGINAL resolution only ----
    x2 = jnp.transpose(x_nchw, (0, 2, 3, 1)).reshape(N, H, WC)          # (N, H, W*C)

    # Row expansion: R[i, h] = 1 iff 1<=i<=Hs and h == (i-1)//s ; zero rows = pad.
    i = jnp.arange(Hs + 2)
    hh = jnp.arange(H)
    in_row = (i >= 1) & (i <= Hs)
    src_row = jnp.clip((i - 1) // s, 0, H - 1)
    Rfull = ((hh[None, :] == src_row[:, None]) & in_row[:, None]).astype(dt)   # (Hs+2, H)
    Rblocks = jnp.stack([Rfull[rb * THS: rb * THS + THS + 2]
                         for rb in range(RB)])                                 # (RB, THs+2, H)

    # Column expansion (block-diagonal over C): Ccol[w*C+c, j*C+c'] =
    #   1 iff c==c' and 1<=j<=Ws and w == (j-1)//s.  Built only to be folded
    #   into the conv weights below (never shipped to the kernel).
    j = jnp.arange(Ws + 2)
    ww = jnp.arange(W)
    in_col = (j >= 1) & (j <= Ws)
    src_col = jnp.clip((j - 1) // s, 0, W - 1)
    colsel = ((ww[:, None] == src_col[None, :]) & in_col[None, :]).astype(dt)  # (W, Ws+2)
    Ccol = jnp.kron(colsel, jnp.eye(C, dtype=dt))                              # (W*C, (Ws+2)*C)

    # Banded conv weights: M[kh, jp*C+c, b*O+o] = Wt[kh, jp-b, c, o] for 0<=jp-b<KW.
    kw_idx = j[:, None] - jnp.arange(Ws)[None, :]                              # (Ws+2, Ws)
    valid = (kw_idx >= 0) & (kw_idx < KW)
    kw_cl = jnp.clip(kw_idx, 0, KW - 1)
    M = weight_hwio[:, kw_cl, :, :]                                            # (KH, Ws+2, Ws, C, O)
    M = M * valid[None, :, :, None, None].astype(dt)
    M = jnp.transpose(M, (0, 1, 3, 2, 4)).reshape(KH, (Ws + 2) * C, WSO)       # (KH, (Ws+2)*C, Ws*O)

    # Fold the column expansion into the weights and stack the KH taps along K.
    Mfold = jnp.einsum('ij,kjl->kil', Ccol, M)                                 # (KH, W*C, Ws*O)
    Mstack = Mfold.reshape(K, WSO)                                             # (KH*W*C, Ws*O)

    bias_row = jnp.tile(bias, Ws).reshape(1, WSO).astype(dt)                   # (1, Ws*O)

    kernel = _make_kernel(KH, THS)

    out2 = pl.pallas_call(
        kernel,
        out_shape=jax.ShapeDtypeStruct((N, Hs, WSO), dt),
        grid_spec=pltpu.PrefetchScalarGridSpec(
            num_scalar_prefetch=0,
            grid=(N, RB),
            in_specs=[
                pl.BlockSpec((1, H, WC), lambda n, rb: (n, 0, 0)),
                pl.BlockSpec((1, THS + 2, H), lambda n, rb: (rb, 0, 0)),
                pl.BlockSpec((K, WSO), lambda n, rb: (0, 0)),
                pl.BlockSpec((1, WSO), lambda n, rb: (0, 0)),
            ],
            out_specs=pl.BlockSpec((1, THS, WSO), lambda n, rb: (n, rb, 0)),
        ),
        compiler_params=pltpu.CompilerParams(
            dimension_semantics=("parallel", "parallel")),
    )(x2, Rblocks, Mstack, bias_row)

    # (N, Hs, Ws*O) -> (N, Hs, Ws, O) -> NCHW (single layout pass, needed anyway).
    return jnp.transpose(out2.reshape(N, Hs, Ws, O), (0, 3, 1, 2))


def _reference(x_nchw, weight_hwio, bias, scale_factor):
    """Pure-JAX reference (nearest upsample + lax conv) for correctness check."""
    s = int(scale_factor)
    x = jnp.repeat(jnp.repeat(x_nchw, s, axis=2), s, axis=3)       # nearest, NCHW
    w_oihw = jnp.transpose(weight_hwio, (3, 2, 0, 1))              # HWIO -> OIHW
    out = jax.lax.conv_general_dilated(
        x, w_oihw, window_strides=(1, 1), padding=((1, 1), (1, 1)),
        dimension_numbers=("NCHW", "OIHW", "NCHW"))
    return out + bias[None, :, None, None]


if __name__ == "__main__":
    # Module config: in_channels=4, out_channels=8, kernel_size=3, scale_factor=2
    N, C, O, H, W = 2, 4, 8, 16, 16
    KH = KW = 3
    scale_factor = 2

    key = jax.random.PRNGKey(0)
    kx, kw, kb = jax.random.split(key, 3)

    x = jax.random.normal(kx, (N, C, H, W), dtype=jnp.float32)
    # Synthetic weights stored directly in HWIO layout (PyTorch stores OIHW).
    fan_in = C * KH * KW
    bound = 1.0 / jnp.sqrt(fan_in)
    weight_hwio = jax.random.uniform(kw, (KH, KW, C, O), jnp.float32,
                                     minval=-bound, maxval=bound)
    bias = jax.random.uniform(kb, (O,), jnp.float32, minval=-bound, maxval=bound)

    out = resize_conv2d(x, weight_hwio, bias, scale_factor)
    out = jax.block_until_ready(out)

    ref = _reference(x, weight_hwio, bias, scale_factor)
    ref = jax.block_until_ready(ref)

    assert out.shape == (N, O, H * scale_factor, W * scale_factor), out.shape
    assert jnp.allclose(out, ref, atol=1e-4, rtol=1e-4), \
        float(jnp.max(jnp.abs(out - ref)))

    print("KERNEL_OK")
</pallas_src>

<mosaic_0001>
module attributes {stable_mosaic.version = 11 : i64} {
  func.func @kernel(%arg0: i32, %arg1: i32, %arg2: memref<1x16x64xf32, #tpu.memory_space<vmem>>, %arg3: memref<1x34x16xf32, #tpu.memory_space<vmem>>, %arg4: memref<192x256xf32, #tpu.memory_space<vmem>>, %arg5: memref<1x256xf32, #tpu.memory_space<vmem>>, %arg6: memref<1x32x256xf32, #tpu.memory_space<vmem>>) attributes {dimension_semantics = [#tpu.dimension_semantics<parallel>, #tpu.dimension_semantics<parallel>], iteration_bounds = array<i64: 2, 1>, scalar_prefetch = 0 : i64, scratch_operands = 0 : i64, tpu.core_type = #tpu.core_type<tc>, window_params = [{transform_indices = @transform_0, window_bounds = array<i64: 1, 16, 64>}, {transform_indices = @transform_1, window_bounds = array<i64: 1, 34, 16>}, {pipeline_mode = #tpu.pipeline_mode<synchronous>, transform_indices = @transform_2, window_bounds = array<i64: 192, 256>}, {pipeline_mode = #tpu.pipeline_mode<synchronous>, transform_indices = @transform_3, window_bounds = array<i64: 1, 256>}, {transform_indices = @transform_4, window_bounds = array<i64: 1, 32, 256>}]} {
    %c0 = arith.constant 0 : index
    %c0_0 = arith.constant 0 : index
    %c0_1 = arith.constant 0 : index
    %0 = vector.load %arg2[%c0, %c0_0, %c0_1] : memref<1x16x64xf32, #tpu.memory_space<vmem>>, vector<1x16x64xf32>
    %1 = vector.shape_cast %0 : vector<1x16x64xf32> to vector<16x64xf32>
    %c0_2 = arith.constant 0 : index
    %c0_3 = arith.constant 0 : index
    %c0_4 = arith.constant 0 : index
    %2 = vector.load %arg3[%c0_2, %c0_3, %c0_4] : memref<1x34x16xf32, #tpu.memory_space<vmem>>, vector<1x34x16xf32>
    %3 = vector.shape_cast %2 : vector<1x34x16xf32> to vector<34x16xf32>
    %cst = arith.constant dense<0.000000e+00> : vector<34x64xf32>
    %4 = tpu.matmul %3, %1, %cst {dimension_numbers = #tpu.dot_dimension_numbers<[1], [0], [0], [1], [0, 0, 1, 1], [], []>} : vector<34x16xf32>, vector<16x64xf32>, vector<34x64xf32> -> vector<34x64xf32>
    %5 = vector.extract_strided_slice %4 {offsets = [0, 0], sizes = [32, 64], strides = [1, 1]} : vector<34x64xf32> to vector<32x64xf32>
    %6 = vector.extract_strided_slice %4 {offsets = [1, 0], sizes = [32, 64], strides = [1, 1]} : vector<34x64xf32> to vector<32x64xf32>
    %7 = vector.extract_strided_slice %4 {offsets = [2, 0], sizes = [32, 64], strides = [1, 1]} : vector<34x64xf32> to vector<32x64xf32>
    %8 = tpu.concatenate %5, %6, %7 in 1 : vector<32x64xf32>, vector<32x64xf32>, vector<32x64xf32> -> vector<32x192xf32>
    %c0_5 = arith.constant 0 : index
    %c0_6 = arith.constant 0 : index
    %9 = vector.load %arg4[%c0_5, %c0_6] : memref<192x256xf32, #tpu.memory_space<vmem>>, vector<192x256xf32>
    %cst_7 = arith.constant dense<0.000000e+00> : vector<32x256xf32>
    %10 = tpu.matmul %8, %9, %cst_7 {dimension_numbers = #tpu.dot_dimension_numbers<[1], [0], [0], [1], [0, 0, 1, 1], [], []>} : vector<32x192xf32>, vector<192x256xf32>, vector<32x256xf32> -> vector<32x256xf32>
    %c0_8 = arith.constant 0 : index
    %c0_9 = arith.constant 0 : index
    %11 = vector.load %arg5[%c0_8, %c0_9] : memref<1x256xf32, #tpu.memory_space<vmem>>, vector<1x256xf32>
    %12 = vector.broadcast %11 : vector<1x256xf32> to vector<32x256xf32>
    %13 = arith.addf %10, %12 : vector<32x256xf32>
    %c0_10 = arith.constant 0 : index
    %c0_11 = arith.constant 0 : index
    %c0_12 = arith.constant 0 : index
    %14 = vector.load %arg6[%c0_10, %c0_11, %c0_12] : memref<1x32x256xf32, #tpu.memory_space<vmem>>, vector<1x32x256xf32>
    %15 = vector.shape_cast %14 : vector<1x32x256xf32> to vector<32x256xf32>
    %16 = vector.shape_cast %13 : vector<32x256xf32> to vector<1x32x256xf32>
    tpu.vector_store %arg6[%c0_10, %c0_11, %c0_12], %16 {strides = array<i32>} : memref<1x32x256xf32, #tpu.memory_space<vmem>>, vector<1x32x256xf32>,
    return
  }
  func.func @transform_0(%arg0: i32, %arg1: i32) -> (i32, i32, i32) {
    %c0_i32 = arith.constant 0 : i32
    %c0_i32_0 = arith.constant 0 : i32
    %c0_i32_1 = arith.constant 0 : i32
    return %arg0, %c0_i32, %c0_i32_0 : i32, i32, i32
  }
  func.func @transform_1(%arg0: i32, %arg1: i32) -> (i32, i32, i32) {
    %c0_i32 = arith.constant 0 : i32
    %c0_i32_0 = arith.constant 0 : i32
    %c0_i32_1 = arith.constant 0 : i32
    return %arg1, %c0_i32, %c0_i32_0 : i32, i32, i32
  }
  func.func @transform_2(%arg0: i32, %arg1: i32) -> (i32, i32) {
    %c0_i32 = arith.constant 0 : i32
    %c0_i32_0 = arith.constant 0 : i32
    %c0_i32_1 = arith.constant 0 : i32
    return %c0_i32, %c0_i32_0 : i32, i32
  }
  func.func @transform_3(%arg0: i32, %arg1: i32) -> (i32, i32) {
    %c0_i32 = arith.constant 0 : i32
    %c0_i32_0 = arith.constant 0 : i32
    %c0_i32_1 = arith.constant 0 : i32
    return %c0_i32, %c0_i32_0 : i32, i32
  }
  func.func @transform_4(%arg0: i32, %arg1: i32) -> (i32, i32, i32) {
    %c0_i32 = arith.constant 0 : i32
    %c0_i32_0 = arith.constant 0 : i32
    return %arg0, %arg1, %c0_i32 : i32, i32, i32
  }
}

</mosaic_0001>

<llo_original>
// kernel: tpu_custom_call.1
$region0: #{tpu_custom_call.1}
  #allocation0 [shape = 'u32[]', space=smem, size = 0x4, offset = 0x4, fixed_abs, tag = 'smem constant byte address 0x4 - core index']
  #allocation1 [shape = 'u32[144,128]{1,0:T(1,128)}', space=vmem, size = 0x12000, scoped, tag = 'internal scratch']
  %s0 = inlined_call_operand.vmem [shape: f32[2,16,64], index: 0, kind: input, shape index: {}]
  %s1 = inlined_call_operand.vmem [shape: f32[1,34,16], index: 1, kind: input, shape index: {}]
  %s2 = inlined_call_operand.hbm [shape: f32[192,256], index: 2, kind: input, shape index: {}]
  %s3 = inlined_call_operand.vmem [shape: f32[1,256], index: 3, kind: input, shape index: {}]
  %s4 = inlined_call_operand.hbm [shape: f32[2,32,256], index: 4, kind: output, shape index: {}]
  %s5 = sld [smem:[#allocation0]]
  $region53: #{tpu_custom_call.1} parent=0
    _
  %s7 = ssub.s32 1, %s5
  %s8 = scalar_select 0, %s7, %s5
  $region1: #{tpu_custom_call.1} parent=0
    #allocation2 [shape = 'u8[196608]{0}', space=vmem, size = 0x30000, scoped, tag = 'input window, operand 2, single buffered']
    #allocation3 [shape = 's32[2]{0}', space=sflag, size = 0x8, scoped, tag = 'scoped memory for tpu_custom_call.1']
    #allocation4 [shape = 's32[2]{0}', space=sflag, size = 0x8, scoped, tag = 'scoped memory for tpu_custom_call.1']
    #allocation5 [shape = 'u8[65536]{0}', space=vmem, size = 0x10000, scoped, tag = 'output window, operand 0']
    %9 = vsyncpa [#allocation3], 0
    %10 = vsyncpa [#allocation4], 0
    %s11 = scalar_lea.sflag [#allocation4], 1
    %12 = vsyncpa %s11, 0
    loop: start=0, step=1, limit=4
    $region2: #{tpu_custom_call.1} parent=1 // loop_pre_header
      _
    $region3: #{tpu_custom_call.1} parent=1 // loop_header
      %s14 = sphi 0, %s18
      %p15 = scmp.ge.s32.totalorder %s14, 4
      %s21 = sphi 0, %s33
      %s22 = sphi 0, %s29
      %s23 = sphi 0, %s21
      %s24 = sphi 0, %s22
      %s25 = sphi 0, %s23
      %s26 = sphi 0, %s24
      %s36 = sphi 0, %s38
      %s39 = sphi 0, %s36
      %s40 = sphi 0, %s39
      %s56 = sphi 0, %s40
      %s62 = sphi 0, %s64
      %s65 = sphi 0, %s62
      %s66 = sphi 0, %s65
      %s82 = sphi 0, %s66
      %s86 = sphi 0, %s86
      %s88 = sphi 0, %s86
      %s89 = sphi 0, %s88
      %s103 = sphi 0, %s89
      %s107 = sphi 0, %s107
      %s109 = sphi 0, %s107
      %s110 = sphi 0, %s109
      %s124 = sphi 0, %s110
      %s132 = sphi 0, %s134
      %s135 = sphi 0, %s132
      %s136 = sphi 0, %s135
      %s152 = sphi 0, %s136
    $region4: #{tpu_custom_call.1} parent=1 // loop_header_branch
      %17 = sbr.rel (%p15) target = $region8
    $region5: #{tpu_custom_call.1} parent=1 // loop_body
      %s19 = ssub.s32 %s14, 1
      %s20 = ssub.s32 %s14, 2
      %s27 = sadd.s32 1, %s22
      %p28 = scmp.ge.s32.totalorder %s27, 1
      %s29 = scalar_select %p28, 0, %s27
      %s30 = sadd.s32 1, %s21
      %s31 = scalar_select %p28, %s30, %s21
      %p32 = scmp.ge.s32.totalorder %s31, 2
      %s33 = scalar_select %p32, 0, %s31
      %s34 = ssub.s32 %s21, %s33
      %p35 = scmp.eq.s32.totalorder %s34, 0
      %s37 = sadd.s32 %s36, 1
      %s38 = scalar_select %p35, %s36, %s37
      %p41 = pneg %p35
      %p42 = scmp.eq.s32.totalorder %s14, 1
      %p43 = por %p41, %p42
      %p44 = scmp.ne.s32.totalorder %s36, %s39
      %p45 = scmp.eq.s32.totalorder %s14, 0
      %p46 = por %p44, %p45
      %p47 = scmp.ne.s32.totalorder %s36, %s39
      %p48 = scmp.eq.s32.totalorder %s19, 1
      %p49 = por %p47, %p48
      %p50 = scmp.ne.s32.totalorder %s39, %s40
      %p51 = scmp.eq.s32.totalorder %s19, 0
      %p52 = por %p50, %p51
      %p53 = scmp.ne.s32.totalorder %s39, %s40
      %p54 = scmp.eq.s32.totalorder %s20, 1
      %p55 = por %p53, %p54
      %p57 = scmp.ne.s32.totalorder %s40, %s56
      %p58 = scmp.eq.s32.totalorder %s20, 0
      %p59 = por %p57, %p58
      %s60 = ssub.s32 %s22, %s29
      %p61 = scmp.eq.s32.totalorder %s60, 0
      %s63 = sadd.s32 %s62, 1
      %s64 = scalar_select %p61, %s62, %s63
      %p67 = pneg %p61
      %p68 = scmp.eq.s32.totalorder %s14, 1
      %p69 = por %p67, %p68
      %p70 = scmp.ne.s32.totalorder %s62, %s65
      %p71 = scmp.eq.s32.totalorder %s14, 0
      %p72 = por %p70, %p71
      %p73 = scmp.ne.s32.totalorder %s62, %s65
      %p74 = scmp.eq.s32.totalorder %s19, 1
      %p75 = por %p73, %p74
      %p76 = scmp.ne.s32.totalorder %s65, %s66
      %p77 = scmp.eq.s32.totalorder %s19, 0
      %p78 = por %p76, %p77
      %p79 = scmp.ne.s32.totalorder %s65, %s66
      %p80 = scmp.eq.s32.totalorder %s20, 1
      %p81 = por %p79, %p80
      %p83 = scmp.ne.s32.totalorder %s66, %s82
      %p84 = scmp.eq.s32.totalorder %s20, 0
      %p85 = por %p83, %p84
      %s87 = sadd.s32 %s86, 1
      %p90 = scmp.eq.s32.totalorder %s14, 1
      %p91 = scmp.ne.s32.totalorder %s86, %s88
      %p92 = scmp.eq.s32.totalorder %s14, 0
      %p93 = por %p91, %p92
      %p94 = scmp.ne.s32.totalorder %s86, %s88
      %p95 = scmp.eq.s32.totalorder %s19, 1
      %p96 = por %p94, %p95
      %p97 = scmp.ne.s32.totalorder %s88, %s89
      %p98 = scmp.eq.s32.totalorder %s19, 0
      %p99 = por %p97, %p98
      %p100 = scmp.ne.s32.totalorder %s88, %s89
      %p101 = scmp.eq.s32.totalorder %s20, 1
      %p102 = por %p100, %p101
      %p104 = scmp.ne.s32.totalorder %s89, %s103
      %p105 = scmp.eq.s32.totalorder %s20, 0
      %p106 = por %p104, %p105
      %s108 = sadd.s32 %s107, 1
      %p111 = scmp.eq.s32.totalorder %s14, 1
      %p112 = scmp.ne.s32.totalorder %s107, %s109
      %p113 = scmp.eq.s32.totalorder %s14, 0
      %p114 = por %p112, %p113
      %p115 = scmp.ne.s32.totalorder %s107, %s109
      %p116 = scmp.eq.s32.totalorder %s19, 1
      %p117 = por %p115, %p116
      %p118 = scmp.ne.s32.totalorder %s109, %s110
      %p119 = scmp.eq.s32.totalorder %s19, 0
      %p120 = por %p118, %p119
      %p121 = scmp.ne.s32.totalorder %s109, %s110
      %p122 = scmp.eq.s32.totalorder %s20, 1
      %p123 = por %p121, %p122
      %p125 = scmp.ne.s32.totalorder %s110, %s124
      %p126 = scmp.eq.s32.totalorder %s20, 0
      %p127 = por %p125, %p126
      %s128 = ssub.s32 %s21, %s33
      %s129 = ssub.s32 %s22, %s29
      %s130 = sor.u32 %s128, %s129
      %p131 = scmp.eq.s32.totalorder %s130, 0
      %s133 = sadd.s32 %s132, 1
      %s134 = scalar_select %p131, %s132, %s133
      %p137 = pneg %p131
      %p138 = scmp.eq.s32.totalorder %s14, 1
      %p139 = por %p137, %p138
      %p140 = scmp.ne.s32.totalorder %s132, %s135
      %p141 = scmp.eq.s32.totalorder %s14, 0
      %p142 = por %p140, %p141
      %p143 = scmp.ne.s32.totalorder %s132, %s135
      %p144 = scmp.eq.s32.totalorder %s19, 1
      %p145 = por %p143, %p144
      %p146 = scmp.ne.s32.totalorder %s135, %s136
      %p147 = scmp.eq.s32.totalorder %s19, 0
      %p148 = por %p146, %p147
      %p149 = scmp.ne.s32.totalorder %s135, %s136
      %p150 = scmp.eq.s32.totalorder %s20, 1
      %p151 = por %p149, %p150
      %p153 = scmp.ne.s32.totalorder %s136, %s152
      %p154 = scmp.eq.s32.totalorder %s20, 0
      %p155 = por %p153, %p154
      %p156 = scmp.le.s32.totalorder 1, %s14
      %p157 = scmp.lt.s32.totalorder %s14, 3
      %p158 = pnand %p156, %p157
      %p159 = pneg %p158
      // Predicated region
      $region9: #{tpu_custom_call.1} parent=5 // pred_check
        _
      $region10: #{tpu_custom_call.1} parent=5 // pred_check_branch
        %161 = sbr.rel (%p158) target = $region12
      $region11: #{tpu_custom_call.1} parent=5 // pred_region
        %s162 = ssub.s32 %s14, 1
        // Predicated region
        $region13: #{tpu_custom_call.1} parent=11 // pred_check
          %p163 = pneg %p78
        $region14: #{tpu_custom_call.1} parent=11 // pred_check_branch
          %165 = sbr.rel (%p163) target = $region16
        $region15: #{tpu_custom_call.1} parent=11 // pred_region
          %p166 = scmp.lt.s32.totalorder %s24, 0
          %s167 = scalar_select %p166, %s24, 0
          %s168 = smul.addr %s167, 5
          %s169 = smul.addr %s168, 8
          %s170 = scalar_lea.vmem %s1, %s169
        $region16: #{tpu_custom_call.1} parent=11 // pred_fallthru
          _
        // Predicated region
        $region17: #{tpu_custom_call.1} parent=11 // pred_check
          %p171 = pneg %p99
        $region18: #{tpu_custom_call.1} parent=11 // pred_check_branch
          %173 = sbr.rel (%p171) target = $region20
        $region19: #{tpu_custom_call.1} parent=11 // pred_region
          %s175 = ssub.s32 6144, 6144
          %176 = vsyncadd [#allocation3], %s175
          %s177 = sshll.u32 [#allocation2], 4
          %s178 = int_to_ptr.vmem [resolvable:$true] %s177
          %183 = dma.hbm_to_vmem [thread:$0]  %s2, 6144, %s178, [#allocation3], 256, 256, 16
        $region20: #{tpu_custom_call.1} parent=11 // pred_fallthru
          _
        // Predicated region
        $region21: #{tpu_custom_call.1} parent=11 // pred_check
          %p184 = pneg %p120
        $region22: #{tpu_custom_call.1} parent=11 // pred_check_branch
          %186 = sbr.rel (%p184) target = $region24
        $region23: #{tpu_custom_call.1} parent=11 // pred_region
          _
        $region24: #{tpu_custom_call.1} parent=11 // pred_fallthru
          _
      $region12: #{tpu_custom_call.1} parent=5 // pred_fallthru
        _
      %p187 = scmp.lt.s32.totalorder %s14, 2
      // Predicated region
      $region25: #{tpu_custom_call.1} parent=5 // pred_check
        %p188 = pneg %p187
      $region26: #{tpu_custom_call.1} parent=5 // pred_check_branch
        %190 = sbr.rel (%p188) target = $region28
      $region27: #{tpu_custom_call.1} parent=5 // pred_region
        // Predicated region
        $region29: #{tpu_custom_call.1} parent=27 // pred_check
          %p191 = pneg %p46
        $region30: #{tpu_custom_call.1} parent=27 // pred_check_branch
          %193 = sbr.rel (%p191) target = $region32
        $region31: #{tpu_custom_call.1} parent=27 // pred_region
          %p194 = scmp.lt.s32.totalorder %s21, 1
          %s195 = scalar_select %p194, %s21, 1
          %s196 = smul.addr %s195, 2
          %s197 = smul.addr %s196, 8
          %s198 = scalar_lea.vmem %s0, %s197
        $region32: #{tpu_custom_call.1} parent=27 // pred_fallthru
          _
      $region28: #{tpu_custom_call.1} parent=5 // pred_fallthru
        _
      %p199 = scmp.le.s32.totalorder 1, %s14
      %p200 = scmp.lt.s32.totalorder %s14, 3
      %p201 = pnand %p199, %p200
      %p202 = pneg %p201
      // Predicated region
      $region33: #{tpu_custom_call.1} parent=5 // pred_check
        _
      $region34: #{tpu_custom_call.1} parent=5 // pred_check_branch
        %204 = sbr.rel (%p201) target = $region36
      $region35: #{tpu_custom_call.1} parent=5 // pred_region
        %s205 = ssub.s32 %s14, 1
        // Predicated region
        $region37: #{tpu_custom_call.1} parent=35 // pred_check
          %p206 = pneg %p99
        $region38: #{tpu_custom_call.1} parent=35 // pred_check_branch
          %208 = sbr.rel (%p206) target = $region40
        $region39: #{tpu_custom_call.1} parent=35 // pred_region
          %209 = dma.done [#allocation3], 6144
        $region40: #{tpu_custom_call.1} parent=35 // pred_fallthru
          _
        %p210 = scmp.lt.s32.totalorder %s23, 1
        %s211 = scalar_select %p210, %s23, 1
        %s212 = smul.addr %s211, 2
        %s213 = smul.addr %s212, 8
        %s214 = scalar_lea.vmem %s0, %s213
        %p215 = pneg %p52
        %p216 = pneg %p49
        %p217 = scmp.lt.s32.totalorder %s24, 0
        %s218 = scalar_select %p217, %s24, 0
        %s219 = smul.addr %s218, 5
        %s220 = smul.addr %s219, 8
        %s221 = scalar_lea.vmem %s1, %s220
        %p222 = pneg %p78
        %p223 = pneg %p75
        %p224 = pneg %p99
        %p225 = pneg %p96
        %p226 = pneg %p120
        %p227 = pneg %p117
        %p228 = pneg %p148
        %p229 = pneg %p145
        %s230 = sand.u32 %s135, 1
        %s231 = scalar_lea.sflag [#allocation4], %s230
        %s232 = sand.u32 %s135, 1
        %s233 = smul.addr %s232, 64
        %s234 = scalar_lea.vmem [#allocation5], %s233
        %p235 = scmp.lt.s32.totalorder %s23, 1
        %s236 = scalar_select %p235, %s23, 1
        %s237 = smul.addr %s236, 2
        %s238 = smul.addr %s237, 8
        %s239 = scalar_lea.vmem %s0, %s238
        %p240 = scmp.lt.s32.totalorder %s24, 0
        %s241 = scalar_select %p240, %s24, 0
        %s242 = smul.addr %s241, 5
        %s243 = smul.addr %s242, 8
        %s244 = scalar_lea.vmem %s1, %s243
        %s245 = smul.u32 4, %s24
        %v246 = vld [vmem:[%s239] sm:$0xff]
        %v247 = vld [vmem:[%s239 + $0x8] sm:$0xff]
        %v248 = vld [vmem:[%s244] sm:$0xff]
        %v249 = vld [vmem:[%s244 + $0x8] sm:$0xff]
        %v250 = vld [vmem:[%s244 + $0x10] sm:$0xff]
        %v251 = vld [vmem:[%s244 + $0x18] sm:$0xff]
        %v252 = vld [vmem:[%s244 + $0x20] sm:$0x3]
        %vm253 = vcmask 130048
        %v255 = vsel %vm253, %v248, 0
        %v258 = vsel %vm253, %v249, 0
        %v261 = vsel %vm253, %v250, 0
        %v264 = vsel %vm253, %v251, 0
        %v267 = vsel %vm253, %v252, 0
        %269 = vmatprep.subr.mxu0 0.0
        %270 = vmatpush1.msra.mxu0 0.0
        %271 = vmatprep.subr.mxu0 0.0
        %272 = vmatpush1.msra.mxu0 0.0
        %273 = vmatprep.subr.mxu0 0.0
        %274 = vmatpush1.msra.mxu0 0.0
        %275 = vmatprep.subr.mxu0 0.0
        %276 = vmatpush1.msra.mxu0 0.0
        %277 = vmatprep.subr.mxu0 0.0
        %278 = vmatpush1.msra.mxu0 0.0
        %279 = vmatprep.subr.mxu0 0.0
        %280 = vmatpush1.msra.mxu0 0.0
        %281 = vmatprep.subr.mxu0 0.0
        %282 = vmatpush1.msra.mxu0 0.0
        %283 = vmatprep.subr.mxu0 0.0
        %284 = vmatpush1.msra.mxu0 0.0
        %285 = vmatprep.subr.mxu0 0.0
        %286 = vmatpush1.msra.mxu0 0.0
        %287 = vmatprep.subr.mxu0 0.0
        %288 = vmatpush1.msra.mxu0 0.0
        %289 = vmatprep.subr.mxu0 0.0
        %290 = vmatpush1.msra.mxu0 0.0
        %291 = vmatprep.subr.mxu0 0.0
        %292 = vmatpush1.msra.mxu0 0.0
        %293 = vmatprep.subr.mxu0 0.0
        %294 = vmatpush1.msra.mxu0 0.0
        %295 = vmatprep.subr.mxu0 0.0
        %296 = vmatpush1.msra.mxu0 0.0
        %297 = vmatprep.subr.mxu0 0.0
        %298 = vmatpush1.msra.mxu0 %v247
        %299 = vmatprep.subr.mxu0 0.0
        %300 = vmatpush1.msra.mxu0 %v246
        %301 = vmatprep.subr.mxu0 0.0
        %302 = vmatpush2.msra.mxu0 0.0
        %303 = vmatprep.subr.mxu0 0.0
        %304 = vmatpush2.msra.mxu0 0.0
        %305 = vmatprep.subr.mxu0 0.0
        %306 = vmatpush2.msra.mxu0 0.0
        %307 = vmatprep.subr.mxu0 0.0
        %308 = vmatpush2.msra.mxu0 0.0
        %309 = vmatprep.subr.mxu0 0.0
        %310 = vmatpush2.msra.mxu0 0.0
        %311 = vmatprep.subr.mxu0 0.0
        %312 = vmatpush2.msra.mxu0 0.0
        %313 = vmatprep.subr.mxu0 0.0
        %314 = vmatpush2.msra.mxu0 0.0
        %315 = vmatprep.subr.mxu0 0.0
        %316 = vmatpush2.msra.mxu0 0.0
        %317 = vmatprep.subr.mxu0 0.0
        %318 = vmatpush2.msra.mxu0 0.0
        %319 = vmatprep.subr.mxu0 0.0
        %320 = vmatpush2.msra.mxu0 0.0
        %321 = vmatprep.subr.mxu0 0.0
        %322 = vmatpush2.msra.mxu0 0.0
        %323 = vmatprep.subr.mxu0 0.0
        %324 = vmatpush2.msra.mxu0 0.0
        %325 = vmatprep.subr.mxu0 0.0
        %326 = vmatpush2.msra.mxu0 0.0
        %327 = vmatprep.subr.mxu0 0.0
        %328 = vmatpush2.msra.mxu0 0.0
        %329 = vmatprep.subr.mxu0 0.0
        %330 = vmatpush2.msra.mxu0 0.0
        %331 = vmatprep.subr.mxu0 0.0
        %332 = vmatpush2.msra.mxu0 0.0
        %333 = vmatprep.mubr.f32.mxu0 0.0
        %334 = vmatmul.mubr.f32.gmra.mxu0 %v255
        %v335 = vpop.f32.mrf.mxu0
        %v336 = vadd.f32 0.0, %v335
        %v337 = vpop.f32.mrf.mxu0
        %338 = vmatprep.mubr.f32.mxu0 0.0
        %339 = vmatmul.mubr.f32.gmra.mxu0 %v258
        %v340 = vpop.f32.mrf.mxu0
        %v341 = vadd.f32 0.0, %v340
        %v342 = vpop.f32.mrf.mxu0
        %343 = vmatprep.mubr.f32.mxu0 0.0
        %344 = vmatmul.mubr.f32.gmra.mxu0 %v261
        %v345 = vpop.f32.mrf.mxu0
        %v346 = vadd.f32 0.0, %v345
        %v347 = vpop.f32.mrf.mxu0
        %348 = vmatprep.mubr.f32.mxu0 0.0
        %349 = vmatmul.mubr.f32.gmra.mxu0 %v264
        %v350 = vpop.f32.mrf.mxu0
        %v351 = vadd.f32 0.0, %v350
        %v352 = vpop.f32.mrf.mxu0
        %353 = vmatprep.mubr.f32.mxu0 0.0
        %354 = vmatmul.mubr.f32.gmra.mxu0 %v267
        %v355 = vpop.f32.mrf.mxu0
        %v356 = vadd.f32 0.0, %v355
        %v357 = vpop.f32.mrf.mxu0
        %358 = vdwg.mxu0
        %vm364 = vcmask 1046528
        %v365 = vrot.slane %v336, 1
        %v366 = vrot.slane %v341, 1
        %v367 = vsel %vm364, %v365, %v366
        %v368 = vrot.slane %v346, 1
        %v369 = vsel %vm364, %v366, %v368
        %v370 = vrot.slane %v351, 1
        %v371 = vsel %vm364, %v368, %v370
        %v372 = vrot.slane %v356, 1
        %v373 = vsel %vm364, %v370, %v372
        %374 = vrot.lane.b32.xlu0 %v367, 64
        %v375 = vpop.permute.xlu0 %374
        %376 = vrot.lane.b32.xlu0 %v369, 64
        %v377 = vpop.permute.xlu0 %376
        %378 = vrot.lane.b32.xlu0 %v371, 64
        %v379 = vpop.permute.xlu0 %378
        %380 = vrot.lane.b32.xlu0 %v373, 64
        %v381 = vpop.permute.xlu0 %380
        %vm386 = vcmask 1045504
        %v387 = vrot.slane %v336, 2
        %v388 = vrot.slane %v341, 2
        %v389 = vsel %vm386, %v387, %v388
        %v390 = vrot.slane %v346, 2
        %v391 = vsel %vm386, %v388, %v390
        %v392 = vrot.slane %v351, 2
        %v393 = vsel %vm386, %v390, %v392
        %v394 = vrot.slane %v356, 2
        %v395 = vsel %vm386, %v392, %v394
        %vm396 = vcmask 523264
        %v397 = vsel %vm396, %v336, %v375
        %v398 = vsel %vm396, %v341, %v377
        %v399 = vsel %vm396, %v346, %v379
        %v400 = vsel %vm396, %v351, %v381
        %v401 = vld [vmem:[#allocation2] sm:$0xff]
        %v402 = vld [vmem:[#allocation2 + $0x8] sm:$0xff]
        %v403 = vld [vmem:[#allocation2 + $0x10] sm:$0xff]
        %v404 = vld [vmem:[#allocation2 + $0x18] sm:$0xff]
        %v405 = vld [vmem:[#allocation2 + $0x20] sm:$0xff]
        %v406 = vld [vmem:[#allocation2 + $0x28] sm:$0xff]
        %v407 = vld [vmem:[#allocation2 + $0x30] sm:$0xff]
        %v408 = vld [vmem:[#allocation2 + $0x38] sm:$0xff]
        %v409 = vld [vmem:[#allocation2 + $0x40] sm:$0xff]
        %v410 = vld [vmem:[#allocation2 + $0x48] sm:$0xff]
        %v411 = vld [vmem:[#allocation2 + $0x50] sm:$0xff]
        %v412 = vld [vmem:[#allocation2 + $0x58] sm:$0xff]
        %v413 = vld [vmem:[#allocation2 + $0x60] sm:$0xff]
        %v414 = vld [vmem:[#allocation2 + $0x68] sm:$0xff]
        %v415 = vld [vmem:[#allocation2 + $0x70] sm:$0xff]
        %v416 = vld [vmem:[#allocation2 + $0x78] sm:$0xff]
        %v417 = vld [vmem:[#allocation2 + $0x80] sm:$0xff]
        %v418 = vld [vmem:[#allocation2 + $0x88] sm:$0xff]
        %v419 = vld [vmem:[#allocation2 + $0x90] sm:$0xff]
        %v420 = vld [vmem:[#allocation2 + $0x98] sm:$0xff]
        %v421 = vld [vmem:[#allocation2 + $0xa0] sm:$0xff]
        %v422 = vld [vmem:[#allocation2 + $0xa8] sm:$0xff]
        %v423 = vld [vmem:[#allocation2 + $0xb0] sm:$0xff]
        %v424 = vld [vmem:[#allocation2 + $0xb8] sm:$0xff]
        %v425 = vld [vmem:[#allocation2 + $0xc0] sm:$0xff]
        %v426 = vld [vmem:[#allocation2 + $0xc8] sm:$0xff]
        %v427 = vld [vmem:[#allocation2 + $0xd0] sm:$0xff]
        %v428 = vld [vmem:[#allocation2 + $0xd8] sm:$0xff]
        %v429 = vld [vmem:[#allocation2 + $0xe0] sm:$0xff]
        %v430 = vld [vmem:[#allocation2 + $0xe8] sm:$0xff]
        %v431 = vld [vmem:[#allocation2 + $0xf0] sm:$0xff]
        %v432 = vld [vmem:[#allocation2 + $0xf8] sm:$0xff]
        %v433 = vld [vmem:[#allocation2 + $0x100] sm:$0xff]
        %v434 = vld [vmem:[#allocation2 + $0x108] sm:$0xff]
        %v435 = vld [vmem:[#allocation2 + $0x110] sm:$0xff]
        %v436 = vld [vmem:[#allocation2 + $0x118] sm:$0xff]
        %v437 = vld [vmem:[#allocation2 + $0x120] sm:$0xff]
        %v438 = vld [vmem:[#allocation2 + $0x128] sm:$0xff]
        %v439 = vld [vmem:[#allocation2 + $0x130] sm:$0xff]
        %v440 = vld [vmem:[#allocation2 + $0x138] sm:$0xff]
        %v441 = vld [vmem:[#allocation2 + $0x140] sm:$0xff]
        %v442 = vld [vmem:[#allocation2 + $0x148] sm:$0xff]
        %v443 = vld [vmem:[#allocation2 + $0x150] sm:$0xff]
        %v444 = vld [vmem:[#allocation2 + $0x158] sm:$0xff]
        %v445 = vld [vmem:[#allocation2 + $0x160] sm:$0xff]
        %v446 = vld [vmem:[#allocation2 + $0x168] sm:$0xff]
        %v447 = vld [vmem:[#allocation2 + $0x170] sm:$0xff]
        %v448 = vld [vmem:[#allocation2 + $0x178] sm:$0xff]
        %v449 = vld [vmem:[%s3] sm:$0x3]
        %v451 = vlaneseq
        %v452 = vshrl.u32 %v451, 7
        %v453 = vsub.s32 0, %v452
        %v454 = vrot.slane %v449, %v453
        %v455 = vlaneseq
        %v456 = vshrl.u32 %v455, 7
        %v457 = vsub.s32 1, %v456
        %v458 = vrot.slane %v449, %v457
        %v461 = vsel %vm396, %v389, 0
        %v463 = vsel %vm396, %v391, 0
        %v465 = vsel %vm396, %v393, 0
        %v467 = vsel %vm396, %v395, 0
        %469 = vmatprep.subr.mxu0 %v432
        %470 = vmatpush1.msra.mxu0 %v431
        %471 = vmatprep.subr.mxu0 %v430
        %472 = vmatpush1.msra.mxu0 %v429
        %473 = vmatprep.subr.mxu0 %v428
        %474 = vmatpush1.msra.mxu0 %v427
        %475 = vmatprep.subr.mxu0 %v426
        %476 = vmatpush1.msra.mxu0 %v425
        %477 = vmatprep.subr.mxu0 %v424
        %478 = vmatpush1.msra.mxu0 %v423
        %479 = vmatprep.subr.mxu0 %v422
        %480 = vmatpush1.msra.mxu0 %v421
        %481 = vmatprep.subr.mxu0 %v420
        %482 = vmatpush1.msra.mxu0 %v419
        %483 = vmatprep.subr.mxu0 %v418
        %484 = vmatpush1.msra.mxu0 %v417
        %485 = vmatprep.subr.mxu0 %v416
        %486 = vmatpush1.msra.mxu0 %v415
        %487 = vmatprep.subr.mxu0 %v414
        %488 = vmatpush1.msra.mxu0 %v413
        %489 = vmatprep.subr.mxu0 %v412
        %490 = vmatpush1.msra.mxu0 %v411
        %491 = vmatprep.subr.mxu0 %v410
        %492 = vmatpush1.msra.mxu0 %v409
        %493 = vmatprep.subr.mxu0 %v408
        %494 = vmatpush1.msra.mxu0 %v407
        %495 = vmatprep.subr.mxu0 %v406
        %496 = vmatpush1.msra.mxu0 %v405
        %497 = vmatprep.subr.mxu0 %v404
        %498 = vmatpush1.msra.mxu0 %v403
        %499 = vmatprep.subr.mxu0 %v402
        %500 = vmatpush1.msra.mxu0 %v401
        %501 = vmatprep.subr.mxu0 0.0
        %502 = vmatpush2.msra.mxu0 0.0
        %503 = vmatprep.subr.mxu0 0.0
        %504 = vmatpush2.msra.mxu0 0.0
        %505 = vmatprep.subr.mxu0 0.0
        %506 = vmatpush2.msra.mxu0 0.0
        %507 = vmatprep.subr.mxu0 0.0
        %508 = vmatpush2.msra.mxu0 0.0
        %509 = vmatprep.subr.mxu0 0.0
        %510 = vmatpush2.msra.mxu0 0.0
        %511 = vmatprep.subr.mxu0 0.0
        %512 = vmatpush2.msra.mxu0 0.0
        %513 = vmatprep.subr.mxu0 0.0
        %514 = vmatpush2.msra.mxu0 0.0
        %515 = vmatprep.subr.mxu0 0.0
        %516 = vmatpush2.msra.mxu0 0.0
        %517 = vmatprep.subr.mxu0 %v448
        %518 = vmatpush2.msra.mxu0 %v447
        %519 = vmatprep.subr.mxu0 %v446
        %520 = vmatpush2.msra.mxu0 %v445
        %521 = vmatprep.subr.mxu0 %v444
        %522 = vmatpush2.msra.mxu0 %v443
        %523 = vmatprep.subr.mxu0 %v442
        %524 = vmatpush2.msra.mxu0 %v441
        %525 = vmatprep.subr.mxu0 %v440
        %526 = vmatpush2.msra.mxu0 %v439
        %527 = vmatprep.subr.mxu0 %v438
        %528 = vmatpush2.msra.mxu0 %v437
        %529 = vmatprep.subr.mxu0 %v436
        %530 = vmatpush2.msra.mxu0 %v435
        %531 = vmatprep.subr.mxu0 %v434
        %532 = vmatpush2.msra.mxu0 %v433
        %533 = vmatprep.mubr.f32.mxu0 %v461
        %534 = vmatmul.mubr.f32.gmra.mxu0 %v397
        %v535 = vpop.f32.mrf.mxu0
        %v536 = vadd.f32 %v454, %v535
        %v537 = vpop.f32.mrf.mxu0
        %v538 = vadd.f32 %v458, %v537
        %539 = vmatprep.mubr.f32.mxu0 %v463
        %540 = vmatmul.mubr.f32.gmra.mxu0 %v398
        %v541 = vpop.f32.mrf.mxu0
        %v542 = vadd.f32 %v454, %v541
        %v543 = vpop.f32.mrf.mxu0
        %v544 = vadd.f32 %v458, %v543
        %545 = vmatprep.mubr.f32.mxu0 %v465
        %546 = vmatmul.mubr.f32.gmra.mxu0 %v399
        %v547 = vpop.f32.mrf.mxu0
        %v548 = vadd.f32 %v454, %v547
        %v549 = vpop.f32.mrf.mxu0
        %v550 = vadd.f32 %v458, %v549
        %551 = vmatprep.mubr.f32.mxu0 %v467
        %552 = vmatmul.mubr.f32.gmra.mxu0 %v400
        %v553 = vpop.f32.mrf.mxu0
        %v554 = vadd.f32 %v454, %v553
        %v555 = vpop.f32.mrf.mxu0
        %v556 = vadd.f32 %v458, %v555
        %557 = vdwg.mxu0
        %558 = vst [vmem:[%s234] sm:$0xff] %v536
        %559 = vst [vmem:[%s234 + $0x8] sm:$0xff] %v538
        %560 = vst [vmem:[%s234 + $0x10] sm:$0xff] %v542
        %561 = vst [vmem:[%s234 + $0x18] sm:$0xff] %v544
        %562 = vst [vmem:[%s234 + $0x20] sm:$0xff] %v548
        %563 = vst [vmem:[%s234 + $0x28] sm:$0xff] %v550
        %564 = vst [vmem:[%s234 + $0x30] sm:$0xff] %v554
        %565 = vst [vmem:[%s234 + $0x38] sm:$0xff] %v556
        %s566 = sand.u32 %s135, 1
        %s567 = scalar_lea.sflag [#allocation4], %s566
        %s568 = sand.u32 %s135, 1
        %s569 = smul.addr %s568, 64
        %s570 = scalar_lea.vmem [#allocation5], %s569
        // Predicated region
        $region41: #{tpu_custom_call.1} parent=35 // pred_check
          %p571 = pneg %p145
        $region42: #{tpu_custom_call.1} parent=35 // pred_check_branch
          %573 = sbr.rel (%p571) target = $region44
        $region43: #{tpu_custom_call.1} parent=35 // pred_region
          %s574 = smul.u32 4, %s24
          %s576 = ssub.s32 1024, 1024
          %577 = vsyncadd %s567, %s576
          %s578 = smul.addr %s574, 2
          %s579 = smul.addr %s23, 8
          %s580 = sadd.s32 %s578, %s579
          %s581 = smul.addr %s580, 128
          %s582 = scalar_lea.hbm %s4, %s581
          %s583 = sshll.u32 %s570, 4
          %s584 = int_to_ptr.vmem [resolvable:$true] %s583
          %589 = dma.vmem_to_hbm [thread:$0]  %s584, 1024, %s582, %s567, 256, 256, 16
        $region44: #{tpu_custom_call.1} parent=35 // pred_fallthru
          _
      $region36: #{tpu_custom_call.1} parent=5 // pred_fallthru
        _
      %p590 = scmp.le.s32.totalorder 2, %s14
      // Predicated region
      $region45: #{tpu_custom_call.1} parent=5 // pred_check
        %p591 = pneg %p590
      $region46: #{tpu_custom_call.1} parent=5 // pred_check_branch
        %593 = sbr.rel (%p591) target = $region48
      $region47: #{tpu_custom_call.1} parent=5 // pred_region
        %s594 = ssub.s32 %s14, 2
        // Predicated region
        $region49: #{tpu_custom_call.1} parent=47 // pred_check
          %p595 = pneg %p151
        $region50: #{tpu_custom_call.1} parent=47 // pred_check_branch
          %597 = sbr.rel (%p595) target = $region52
        $region51: #{tpu_custom_call.1} parent=47 // pred_region
          %s598 = sand.u32 %s136, 1
          %s599 = scalar_lea.sflag [#allocation4], %s598
          %s600 = sand.u32 %s136, 1
          %s601 = smul.addr %s600, 64
          %s602 = scalar_lea.vmem [#allocation5], %s601
          %603 = dma.done %s599, 1024
        $region52: #{tpu_custom_call.1} parent=47 // pred_fallthru
          _
      $region48: #{tpu_custom_call.1} parent=5 // pred_fallthru
        _
    $region6: #{tpu_custom_call.1} parent=1 // loop_footer
      %s18 = sadd.s32 1, %s14
    $region7: #{tpu_custom_call.1} parent=1 // loop_footer_branch
      %13 = sbr.rel target = $region3
    $region8: #{tpu_custom_call.1} parent=1 // loop_exit
      _
    %604 = vsyncpa [#allocation3], 1
    %s605 = scalar_lea.sflag [#allocation3], 1
    %606 = vsyncpa %s605, 1
    %607 = vsyncpa [#allocation4], 1
    %s608 = scalar_lea.sflag [#allocation4], 1
    %609 = vsyncpa %s608, 1

</llo_original>
